<compile_context>
chip_gen: v7x
topology: tpu7x:2x2x1
jax: 0.10.0
libtpu: 0.0.40
codegen_flags: <defaults>
</compile_context>

<pallas_src>
import functools
import math

import jax
import jax.numpy as jnp
from jax.experimental import pallas as pl
from jax.experimental.pallas import tpu as pltpu


def _round_up(v, m):
    return ((v + m - 1) // m) * m


# Generation-aware VMEM cap (64 MiB/TC on v7x, 128 MiB on v5e/v6e).
try:
    _VMEM_CAP = int(getattr(pltpu.get_tpu_info(), "vmem_capacity_bytes",
                            64 * 1024 * 1024))
except Exception:  # conservative fallback
    _VMEM_CAP = 64 * 1024 * 1024
_VMEM_BUDGET = int(0.75 * _VMEM_CAP)   # leave headroom for compiler scratch


def _pick_tk(kp, cap=512):
    """Largest multiple of 128 dividing kp, preferring <= cap but allowing up
    to 2*cap when the only small divisor would force tiny reduction steps."""
    best = 128
    t = 128
    limit = min(kp, 2 * cap)
    while t <= limit:
        if kp % t == 0 and (t <= cap or best < 256):
            best = t
        t += 128
    return best


def _pick_tile(dim, align, cap):
    """Tile for a non-reduction axis: the full dim when exact/cheap, otherwise
    the multiple of `align` (<= cap) minimizing padded work (partial last
    block; Pallas masks OOB writes)."""
    if dim <= align or (dim <= cap and dim % align == 0):
        return dim
    best = align
    best_cost = -(-dim // align) * align
    t = 2 * align
    top = min(cap, dim)
    while t <= top:
        cost = -(-dim // t) * t
        if cost <= best_cost:          # prefer the larger tile on ties
            best, best_cost = t, cost
        t += align
    return best


def _fc_relu_kernel_fused_acc(x_ref, w_ref, b_ref, o_ref):
    """f32 output: the resident output tile doubles as the accumulator."""
    k = pl.program_id(2)
    prod = jnp.dot(x_ref[...], w_ref[...], preferred_element_type=jnp.float32)

    @pl.when(k == 0)
    def _():
        o_ref[...] = prod

    @pl.when(k > 0)
    def _():
        o_ref[...] += prod

    @pl.when(k == pl.num_programs(2) - 1)
    def _():
        o_ref[...] = jnp.maximum(o_ref[...] + b_ref[...], 0.0)


def _fc_relu_kernel_scratch(x_ref, w_ref, b_ref, o_ref, acc_ref):
    """Non-f32 output: accumulate in an f32 VMEM scratch, cast at the end."""
    k = pl.program_id(2)
    prod = jnp.dot(x_ref[...], w_ref[...], preferred_element_type=jnp.float32)

    @pl.when(k == 0)
    def _():
        acc_ref[...] = prod

    @pl.when(k > 0)
    def _():
        acc_ref[...] += prod

    @pl.when(k == pl.num_programs(2) - 1)
    def _():
        o_ref[...] = jnp.maximum(acc_ref[...] + b_ref[...], 0.0).astype(o_ref.dtype)


@functools.partial(jax.jit, static_argnames=("compute_dtype",))
def fc_relu(x, w, b, *, compute_dtype=None):
    """relu(x @ w + b).  x:(M,K), w:(K,N) (= PyTorch weight.T), b:(N,)."""
    M, K = x.shape
    K2, N = w.shape
    assert K == K2 and b.shape == (N,)
    out_dtype = x.dtype

    # Default to the native bf16 MXU path for f32 inputs; accumulation stays
    # f32.  Pass compute_dtype=jnp.float32 for strict precision.
    if compute_dtype is None:
        compute_dtype = (jnp.bfloat16 if jnp.dtype(out_dtype) == jnp.dtype(jnp.float32)
                         else out_dtype)
    compute_dtype = jnp.dtype(compute_dtype)

    # ---- tile selection (padding-aware, MXU/lane aligned) -------------------
    if compute_dtype == jnp.dtype(jnp.bfloat16):
        m_align, cap_m, cap_n = 16, 1024, 1024
    else:
        m_align, cap_m, cap_n = 8, 512, 512

    tm = _pick_tile(M, m_align, cap_m)
    tn = _pick_tile(N, 128, cap_n)

    # Reduction axis: only K may need zero padding (OOB garbage along K would
    # corrupt valid outputs; M/N OOB writes are masked by Pallas).
    if K % 128 == 0:
        Kp = K
        tk = _pick_tk(Kp)
    elif K <= 1024:
        Kp, tk = K, K                      # single full-K block, no padding
    else:
        Kp = _round_up(K, 128)
        tk = _pick_tk(Kp)

    # Give both v7x TensorCores work on skinny problems (parallel axes).
    if pl.cdiv(M, tm) * pl.cdiv(N, tn) < 2:
        if tn >= 256:
            tn = _round_up(pl.cdiv(tn, 2), 128)
        elif tm >= 2 * m_align:
            tm = _round_up(pl.cdiv(tm, 2), m_align)

    # ---- prepare operands (cast first, pad K only; no M/N padding) ----------
    xp = x.astype(compute_dtype) if x.dtype != compute_dtype else x
    wp = w.astype(compute_dtype) if w.dtype != compute_dtype else w
    if Kp != K:
        xp = jnp.pad(xp, ((0, 0), (0, Kp - K)))
        wp = jnp.pad(wp, ((0, Kp - K), (0, 0)))
    bp = b.reshape(1, N).astype(jnp.float32)   # added to the f32 accumulator

    grid = (pl.cdiv(M, tm), pl.cdiv(N, tn), Kp // tk)

    fuse_acc_in_out = jnp.dtype(out_dtype) == jnp.dtype(jnp.float32)
    kernel = _fc_relu_kernel_fused_acc if fuse_acc_in_out else _fc_relu_kernel_scratch
    scratch = () if fuse_acc_in_out else (pltpu.VMEM((tm, tn), jnp.float32),)

    # ---- VMEM budget: double-buffered tiles (+ scratch), generation-capped --
    cbytes = compute_dtype.itemsize
    obytes = jnp.dtype(out_dtype).itemsize
    vmem_need = (2 * tm * tk * cbytes      # x tiles (double-buffered)
                 + 2 * tk * tn * cbytes    # w tiles
                 + 2 * tm * tn * obytes    # output tiles
                 + 2 * tn * 4              # bias tiles
                 + (0 if fuse_acc_in_out else tm * tn * 4))
    vmem_limit = min(_VMEM_BUDGET, max(32 * 1024 * 1024, 2 * vmem_need))

    return pl.pallas_call(
        kernel,
        out_shape=jax.ShapeDtypeStruct((M, N), out_dtype),
        grid_spec=pltpu.PrefetchScalarGridSpec(
            num_scalar_prefetch=0,
            grid=grid,
            in_specs=[
                pl.BlockSpec((tm, tk), lambda i, j, k: (i, k)),   # x tile
                pl.BlockSpec((tk, tn), lambda i, j, k: (k, j)),   # w tile
                pl.BlockSpec((1, tn), lambda i, j, k: (0, j)),    # bias tile
            ],
            out_specs=pl.BlockSpec((tm, tn), lambda i, j, k: (i, j)),
            scratch_shapes=scratch,
        ),
        compiler_params=pltpu.CompilerParams(
            dimension_semantics=("parallel", "parallel", "arbitrary"),
            vmem_limit_bytes=vmem_limit,
        ),
    )(xp, wp, bp)


if __name__ == "__main__":
    key = jax.random.PRNGKey(0)
    kx, kw, kb, k1, k2, k3 = jax.random.split(key, 6)

    # --- Small FCReLU(32 -> 64), strict f32 MXU path ------------------------
    batch, in_features, out_features = 8, 32, 64
    bound = 1.0 / math.sqrt(in_features)
    x = jax.random.normal(kx, (batch, in_features), dtype=jnp.float32)
    w = jax.random.uniform(kw, (in_features, out_features), dtype=jnp.float32,
                           minval=-bound, maxval=bound)
    b = jax.random.uniform(kb, (out_features,), dtype=jnp.float32,
                           minval=-bound, maxval=bound)
    out = jax.block_until_ready(fc_relu(x, w, b, compute_dtype=jnp.float32))
    ref = jnp.maximum(x @ w + b, 0.0)
    assert out.shape == (batch, out_features)
    assert jnp.allclose(out, ref, atol=1e-5, rtol=1e-5)

    # --- Larger, tile-unaligned case on the default bf16 MXU path -----------
    # M/N are NOT padded or sliced; only tiles partially cover them.
    M2, K2, N2 = 600, 640, 384
    x2 = jax.random.normal(k1, (M2, K2), dtype=jnp.float32)
    w2 = jax.random.normal(k2, (K2, N2), dtype=jnp.float32) * 0.02
    b2 = jax.random.normal(k3, (N2,), dtype=jnp.float32) * 0.02
    out2 = jax.block_until_ready(fc_relu(x2, w2, b2))           # bf16 compute
    ref2 = jnp.maximum(
        jnp.dot(x2.astype(jnp.bfloat16), w2.astype(jnp.bfloat16),
                preferred_element_type=jnp.float32) + b2, 0.0)
    assert out2.shape == (M2, N2)
    assert jnp.allclose(out2, ref2, atol=2e-2, rtol=2e-2)

    print("KERNEL_OK")
</pallas_src>

<mosaic_0001>
module attributes {stable_mosaic.version = 11 : i64} {
  func.func @_fc_relu_kernel_fused_acc(%arg0: i32, %arg1: i32, %arg2: i32, %arg3: memref<8x32xf32, #tpu.memory_space<vmem>>, %arg4: memref<32x64xf32, #tpu.memory_space<vmem>>, %arg5: memref<1x64xf32, #tpu.memory_space<vmem>>, %arg6: memref<8x64xf32, #tpu.memory_space<vmem>>) attributes {dimension_semantics = [#tpu.dimension_semantics<parallel>, #tpu.dimension_semantics<parallel>, #tpu.dimension_semantics<arbitrary>], iteration_bounds = array<i64: 1, 1, 1>, scalar_prefetch = 0 : i64, scratch_operands = 0 : i64, tpu.core_type = #tpu.core_type<tc>, window_params = [{transform_indices = @transform_0, window_bounds = array<i64: 8, 32>}, {transform_indices = @transform_1, window_bounds = array<i64: 32, 64>}, {transform_indices = @transform_2, window_bounds = array<i64: 1, 64>}, {transform_indices = @transform_3, window_bounds = array<i64: 8, 64>}]} {
    %c0 = arith.constant 0 : index
    %c0_0 = arith.constant 0 : index
    %0 = vector.load %arg3[%c0, %c0_0] : memref<8x32xf32, #tpu.memory_space<vmem>>, vector<8x32xf32>
    %c0_1 = arith.constant 0 : index
    %c0_2 = arith.constant 0 : index
    %1 = vector.load %arg4[%c0_1, %c0_2] : memref<32x64xf32, #tpu.memory_space<vmem>>, vector<32x64xf32>
    %cst = arith.constant dense<0.000000e+00> : vector<8x64xf32>
    %2 = tpu.matmul %0, %1, %cst {dimension_numbers = #tpu.dot_dimension_numbers<[1], [0], [0], [1], [0, 0, 1, 1], [], []>} : vector<8x32xf32>, vector<32x64xf32>, vector<8x64xf32> -> vector<8x64xf32>
    %c0_i32 = arith.constant 0 : i32
    %3 = arith.cmpi eq, %arg2, %c0_i32 : i32
    %4 = arith.extui %3 : i1 to i32
    %c0_i32_3 = arith.constant 0 : i32
    %5 = arith.cmpi ne, %4, %c0_i32_3 : i32
    scf.if %5 {
      %c0_8 = arith.constant 0 : index
      %c0_9 = arith.constant 0 : index
      %12 = vector.load %arg6[%c0_8, %c0_9] : memref<8x64xf32, #tpu.memory_space<vmem>>, vector<8x64xf32>
      tpu.vector_store %arg6[%c0_8, %c0_9], %2 {strides = array<i32>} : memref<8x64xf32, #tpu.memory_space<vmem>>, vector<8x64xf32>,
    } else {
    }
    %c0_i32_4 = arith.constant 0 : i32
    %6 = arith.cmpi sgt, %arg2, %c0_i32_4 : i32
    %7 = arith.extui %6 : i1 to i32
    %c0_i32_5 = arith.constant 0 : i32
    %8 = arith.cmpi ne, %7, %c0_i32_5 : i32
    scf.if %8 {
      %c0_8 = arith.constant 0 : index
      %c0_9 = arith.constant 0 : index
      %12 = vector.load %arg6[%c0_8, %c0_9] : memref<8x64xf32, #tpu.memory_space<vmem>>, vector<8x64xf32>
      %13 = arith.addf %12, %2 : vector<8x64xf32>
      %c0_10 = arith.constant 0 : index
      %c0_11 = arith.constant 0 : index
      %14 = vector.load %arg6[%c0_10, %c0_11] : memref<8x64xf32, #tpu.memory_space<vmem>>, vector<8x64xf32>
      tpu.vector_store %arg6[%c0_10, %c0_11], %13 {strides = array<i32>} : memref<8x64xf32, #tpu.memory_space<vmem>>, vector<8x64xf32>,
    } else {
    }
    %c0_i32_6 = arith.constant 0 : i32
    %9 = arith.cmpi eq, %arg2, %c0_i32_6 : i32
    %10 = arith.extui %9 : i1 to i32
    %c0_i32_7 = arith.constant 0 : i32
    %11 = arith.cmpi ne, %10, %c0_i32_7 : i32
    scf.if %11 {
      %c0_8 = arith.constant 0 : index
      %c0_9 = arith.constant 0 : index
      %12 = vector.load %arg6[%c0_8, %c0_9] : memref<8x64xf32, #tpu.memory_space<vmem>>, vector<8x64xf32>
      %c0_10 = arith.constant 0 : index
      %c0_11 = arith.constant 0 : index
      %13 = vector.load %arg5[%c0_10, %c0_11] : memref<1x64xf32, #tpu.memory_space<vmem>>, vector<1x64xf32>
      %14 = vector.broadcast %13 : vector<1x64xf32> to vector<8x64xf32>
      %15 = arith.addf %12, %14 : vector<8x64xf32>
      %cst_12 = arith.constant 0.000000e+00 : f32
      %16 = vector.broadcast %cst_12 : f32 to vector<8x64xf32>
      %17 = arith.maximumf %15, %16 : vector<8x64xf32>
      %c0_13 = arith.constant 0 : index
      %c0_14 = arith.constant 0 : index
      %18 = vector.load %arg6[%c0_13, %c0_14] : memref<8x64xf32, #tpu.memory_space<vmem>>, vector<8x64xf32>
      tpu.vector_store %arg6[%c0_13, %c0_14], %17 {strides = array<i32>} : memref<8x64xf32, #tpu.memory_space<vmem>>, vector<8x64xf32>,
    } else {
    }
    return
  }
  func.func @transform_0(%arg0: i32, %arg1: i32, %arg2: i32) -> (i32, i32) {
    %c0_i32 = arith.constant 0 : i32
    return %arg0, %arg2 : i32, i32
  }
  func.func @transform_1(%arg0: i32, %arg1: i32, %arg2: i32) -> (i32, i32) {
    %c0_i32 = arith.constant 0 : i32
    return %arg2, %arg1 : i32, i32
  }
  func.func @transform_2(%arg0: i32, %arg1: i32, %arg2: i32) -> (i32, i32) {
    %c0_i32 = arith.constant 0 : i32
    %c0_i32_0 = arith.constant 0 : i32
    return %c0_i32, %arg1 : i32, i32
  }
  func.func @transform_3(%arg0: i32, %arg1: i32, %arg2: i32) -> (i32, i32) {
    %c0_i32 = arith.constant 0 : i32
    return %arg0, %arg1 : i32, i32
  }
}

</mosaic_0001>

<llo_original>
// kernel: fc_relu.1
$region0: #{fc_relu.1}
  #allocation0 [shape = 'u32[]', space=smem, size = 0x4, offset = 0x4, fixed_abs, tag = 'smem constant byte address 0x4 - core index']
  #allocation1 [shape = 'u32[144,128]{1,0:T(1,128)}', space=vmem, size = 0x12000, scoped, tag = 'internal scratch']
  %s0 = inlined_call_operand.hbm [shape: f32[8,32], index: 0, kind: input, shape index: {}]
  %s1 = inlined_call_operand.hbm [shape: f32[32,64], index: 1, kind: input, shape index: {}]
  %s2 = inlined_call_operand.vmem [shape: f32[1,64], index: 2, kind: input, shape index: {}]
  %s3 = inlined_call_operand.hbm [shape: f32[8,64], index: 3, kind: output, shape index: {}]
  %s4 = sld [smem:[#allocation0]]
  $region42: #{fc_relu.1} parent=0
    _
  %s6 = ssub.s32 1, %s4
  %s7 = scalar_select 0, %s6, %s4
  $region1: #{fc_relu.1} parent=0
    #allocation2 [shape = 'u8[4096]{0}', space=vmem, size = 0x1000, scoped, tag = 'input window, operand 0, single buffered']
    #allocation3 [shape = 's32[1]{0}', space=sflag, size = 0x4, scoped, tag = 'scoped memory for fc_relu.1']
    #allocation4 [shape = 's32[1]{0}', space=sflag, size = 0x4, scoped, tag = 'scoped memory for fc_relu.1']
    #allocation5 [shape = 'u8[16384]{0}', space=vmem, size = 0x4000, scoped, tag = 'input window, operand 1, single buffered']
    #allocation6 [shape = 's32[1]{0}', space=sflag, size = 0x4, scoped, tag = 'scoped memory for fc_relu.1']
    #allocation7 [shape = 'u8[4096]{0}', space=vmem, size = 0x1000, scoped, tag = 'output window, operand 0, single buffered']
    %8 = vsyncpa [#allocation3], 0
    %9 = vsyncpa [#allocation6], 0
    %10 = vsyncpa [#allocation4], 0
    // Predicated region
    $region2: #{fc_relu.1} parent=1 // pred_check
      _
    $region3: #{fc_relu.1} parent=1 // pred_check_branch
      %12 = sbr.rel (0) target = $region5
    $region4: #{fc_relu.1} parent=1 // pred_region
      %s14 = ssub.s32 128, 128
      %15 = vsyncadd [#allocation3], %s14
      %s17 = sshll.u32 [#allocation2], 4
      %s18 = int_to_ptr.vmem [resolvable:$true] %s17
      %20 = dma.hbm_to_vmem [thread:$0]  %s0, 128, %s18, [#allocation3]
    $region5: #{fc_relu.1} parent=1 // pred_fallthru
      _
    // Predicated region
    $region6: #{fc_relu.1} parent=1 // pred_check
      _
    $region7: #{fc_relu.1} parent=1 // pred_check_branch
      %22 = sbr.rel (0) target = $region9
    $region8: #{fc_relu.1} parent=1 // pred_region
      %s24 = ssub.s32 512, 512
      %25 = vsyncadd [#allocation6], %s24
      %s26 = sshll.u32 [#allocation5], 4
      %s27 = int_to_ptr.vmem [resolvable:$true] %s26
      %32 = dma.hbm_to_vmem [thread:$0]  %s1, 512, %s27, [#allocation6], 128, 128, 8
    $region9: #{fc_relu.1} parent=1 // pred_fallthru
      _
    // Predicated region
    $region10: #{fc_relu.1} parent=1 // pred_check
      _
    $region11: #{fc_relu.1} parent=1 // pred_check_branch
      %34 = sbr.rel (0) target = $region13
    $region12: #{fc_relu.1} parent=1 // pred_region
      _
    $region13: #{fc_relu.1} parent=1 // pred_fallthru
      _
    // Predicated region
    $region14: #{fc_relu.1} parent=1 // pred_check
      _
    $region15: #{fc_relu.1} parent=1 // pred_check_branch
      %36 = sbr.rel (0) target = $region17
    $region16: #{fc_relu.1} parent=1 // pred_region
      %37 = dma.done [#allocation3], 128
    $region17: #{fc_relu.1} parent=1 // pred_fallthru
      _
    // Predicated region
    $region18: #{fc_relu.1} parent=1 // pred_check
      _
    $region19: #{fc_relu.1} parent=1 // pred_check_branch
      %39 = sbr.rel (0) target = $region21
    $region20: #{fc_relu.1} parent=1 // pred_region
      %40 = dma.done [#allocation6], 512
    $region21: #{fc_relu.1} parent=1 // pred_fallthru
      _
    %v41 = vld [vmem:[#allocation2] sm:$0xff]
    %v42 = vld [vmem:[#allocation5] sm:$0xff]
    %v43 = vld [vmem:[#allocation5 + $0x8] sm:$0xff]
    %v44 = vld [vmem:[#allocation5 + $0x10] sm:$0xff]
    %v45 = vld [vmem:[#allocation5 + $0x18] sm:$0xff]
    %vm46 = vcmask 261120
    %v48 = vsel %vm46, %v41, 0
    %50 = vmatprep.subr.mxu0 0.0
    %51 = vmatpush1.msra.mxu0 %v42
    %52 = vmatprep.subr.mxu0 0.0
    %53 = vmatpush1.msra.mxu0 %v43
    %54 = vmatprep.subr.mxu0 0.0
    %55 = vmatpush1.msra.mxu0 %v44
    %56 = vmatprep.subr.mxu0 0.0
    %57 = vmatpush1.msra.mxu0 %v45
    %58 = vmatprep.subr.mxu0 0.0
    %59 = vmatpush1.msra.mxu0 0.0
    %60 = vmatprep.subr.mxu0 0.0
    %61 = vmatpush1.msra.mxu0 0.0
    %62 = vmatprep.subr.mxu0 0.0
    %63 = vmatpush1.msra.mxu0 0.0
    %64 = vmatprep.subr.mxu0 0.0
    %65 = vmatpush1.msra.mxu0 0.0
    %66 = vmatprep.subr.mxu0 0.0
    %67 = vmatpush1.msra.mxu0 0.0
    %68 = vmatprep.subr.mxu0 0.0
    %69 = vmatpush1.msra.mxu0 0.0
    %70 = vmatprep.subr.mxu0 0.0
    %71 = vmatpush1.msra.mxu0 0.0
    %72 = vmatprep.subr.mxu0 0.0
    %73 = vmatpush1.msra.mxu0 0.0
    %74 = vmatprep.subr.mxu0 0.0
    %75 = vmatpush1.msra.mxu0 0.0
    %76 = vmatprep.subr.mxu0 0.0
    %77 = vmatpush1.msra.mxu0 0.0
    %78 = vmatprep.subr.mxu0 0.0
    %79 = vmatpush1.msra.mxu0 0.0
    %80 = vmatprep.subr.mxu0 0.0
    %81 = vmatpush1.msra.mxu0 0.0
    %82 = vmatprep.subr.mxu0 0.0
    %83 = vmatpush1.msra.mxu0 0.0
    %84 = vmatprep.subr.mxu0 0.0
    %85 = vmatpush1.msra.mxu0 0.0
    %86 = vmatprep.subr.mxu0 0.0
    %87 = vmatpush1.msra.mxu0 0.0
    %88 = vmatprep.subr.mxu0 0.0
    %89 = vmatpush1.msra.mxu0 0.0
    %90 = vmatprep.subr.mxu0 0.0
    %91 = vmatpush1.msra.mxu0 0.0
    %92 = vmatprep.subr.mxu0 0.0
    %93 = vmatpush1.msra.mxu0 0.0
    %94 = vmatprep.subr.mxu0 0.0
    %95 = vmatpush1.msra.mxu0 0.0
    %96 = vmatprep.subr.mxu0 0.0
    %97 = vmatpush1.msra.mxu0 0.0
    %98 = vmatprep.subr.mxu0 0.0
    %99 = vmatpush1.msra.mxu0 0.0
    %100 = vmatprep.subr.mxu0 0.0
    %101 = vmatpush1.msra.mxu0 0.0
    %102 = vmatprep.subr.mxu0 0.0
    %103 = vmatpush1.msra.mxu0 0.0
    %104 = vmatprep.subr.mxu0 0.0
    %105 = vmatpush1.msra.mxu0 0.0
    %106 = vmatprep.subr.mxu0 0.0
    %107 = vmatpush1.msra.mxu0 0.0
    %108 = vmatprep.subr.mxu0 0.0
    %109 = vmatpush1.msra.mxu0 0.0
    %110 = vmatprep.subr.mxu0 0.0
    %111 = vmatpush1.msra.mxu0 0.0
    %112 = vmatprep.subr.mxu0 0.0
    %113 = vmatpush1.msra.mxu0 0.0
    %114 = vmatprep.mubr.f32.mxu0 0.0
    %115 = vmatmul.mubr.f32.gmra.mrb[0].mxu0 %v48
    %v116 = vpop.f32.mrb[0].mxu0
    %v117 = vadd.f32 0.0, %v116
    %v118 = vpop.f32.mrb[0].mxu0
    %119 = vdwg.mxu0
    %p120 = scmp.eq.s32.totalorder 0, 0
    // Predicated region
    $region22: #{fc_relu.1} parent=1 // pred_check
      %p121 = pneg %p120
    $region23: #{fc_relu.1} parent=1 // pred_check_branch
      %123 = sbr.rel (%p121) target = $region25
    $region24: #{fc_relu.1} parent=1 // pred_region
      %vm124 = vcmask 523264
      %125 = vst.msk [vmem:[#allocation7] sm:$0xff] %vm124, %v117
    $region25: #{fc_relu.1} parent=1 // pred_fallthru
      _
    %p126 = scmp.gt.s32.totalorder 0, 0
    // Predicated region
    $region26: #{fc_relu.1} parent=1 // pred_check
      %p127 = pneg %p126
    $region27: #{fc_relu.1} parent=1 // pred_check_branch
      %129 = sbr.rel (%p127) target = $region29
    $region28: #{fc_relu.1} parent=1 // pred_region
      %v130 = vld [vmem:[#allocation7] sm:$0xff]
      %v131 = vadd.f32 %v130, %v117
      %vm132 = vcmask 523264
      %133 = vst.msk [vmem:[#allocation7] sm:$0xff] %vm132, %v131
    $region29: #{fc_relu.1} parent=1 // pred_fallthru
      _
    // Predicated region
    $region30: #{fc_relu.1} parent=1 // pred_check
      %p134 = pneg %p120
    $region31: #{fc_relu.1} parent=1 // pred_check_branch
      %136 = sbr.rel (%p134) target = $region33
    $region32: #{fc_relu.1} parent=1 // pred_region
      %v137 = vld [vmem:[#allocation7] sm:$0xff]
      %v138 = vld [vmem:[%s2] sm:$0x1]
      %v140 = vlaneseq
      %v141 = vshrl.u32 %v140, 7
      %v142 = vsub.s32 0, %v141
      %v143 = vrot.slane %v138, %v142
      %v145 = vadd.f32 %v137, %v143
      %v146 = vmax.f32 %v145, 0.0
      %vm147 = vcmask 523264
      %148 = vst.msk [vmem:[#allocation7] sm:$0xff] %vm147, %v146
    $region33: #{fc_relu.1} parent=1 // pred_fallthru
      _
    // Predicated region
    $region34: #{fc_relu.1} parent=1 // pred_check
      _
    $region35: #{fc_relu.1} parent=1 // pred_check_branch
      %150 = sbr.rel (0) target = $region37
    $region36: #{fc_relu.1} parent=1 // pred_region
      %s152 = ssub.s32 128, 128
      %153 = vsyncadd [#allocation4], %s152
      %s155 = sshll.u32 [#allocation7], 4
      %s156 = int_to_ptr.vmem [resolvable:$true] %s155
      %158 = dma.vmem_to_hbm [thread:$0]  %s156, 128, %s3, [#allocation4]
    $region37: #{fc_relu.1} parent=1 // pred_fallthru
      _
    // Predicated region
    $region38: #{fc_relu.1} parent=1 // pred_check
      _
    $region39: #{fc_relu.1} parent=1 // pred_check_branch
      %160 = sbr.rel (0) target = $region41
    $region40: #{fc_relu.1} parent=1 // pred_region
      %161 = dma.done [#allocation4], 128
    $region41: #{fc_relu.1} parent=1 // pred_fallthru
      _
    %162 = vsyncpa [#allocation3], 1
    %163 = vsyncpa [#allocation6], 1
    %164 = vsyncpa [#allocation4], 1

</llo_original>
